<compile_context>
chip_gen: v5e
topology: v5e:2x2
jax: 0.10.0
libtpu: 0.0.40
codegen_flags: <defaults>
</compile_context>

<pallas_src>
import numpy as np
import jax
import jax.numpy as jnp
from jax.experimental import pallas as pl
from jax.experimental.pallas import tpu as pltpu

HIDDEN = 300            # logical hidden size (nn.Linear(nin, 300))
HPAD = 384              # 300 padded up to a multiple of 128 lanes
LANE = 128


def _round_up(x, m):
    return (x + m - 1) // m * m


def mlp_kernel(x_ref, w1_ref, b1_ref, w2_ref, b2_ref, w3_ref, b3_ref, o_ref):
    # MXU operands in bf16, f32 accumulation; elementwise math in f32.
    x = x_ref[...].astype(jnp.bfloat16)
    h1 = jnp.dot(x, w1_ref[...], preferred_element_type=jnp.float32) + b1_ref[...]
    h1 = jax.nn.sigmoid(h1)
    h2 = jnp.dot(h1.astype(jnp.bfloat16), w2_ref[...],
                 preferred_element_type=jnp.float32) + b2_ref[...]
    h2 = jax.nn.sigmoid(h2)
    o_ref[...] = (jnp.dot(h2.astype(jnp.bfloat16), w3_ref[...],
                          preferred_element_type=jnp.float32)
                  + b3_ref[...]).astype(o_ref.dtype)


def _pad2(a, rows, cols):
    return jnp.pad(a, ((0, rows - a.shape[0]), (0, cols - a.shape[1])))


def prepare_params(mu, sigma, w1, b1, w2, b2, w3, b3):
    """Fold (x - mu)/sigma into fc1, then pad/cast everything for the kernel."""
    mu = mu.reshape(1, -1).astype(jnp.float32)
    sigma = sigma.reshape(1, -1).astype(jnp.float32)     # already guarded >= 1e-12
    inv_sigma = 1.0 / sigma
    w1f = w1 * inv_sigma.reshape(-1, 1)                  # (nin, H)
    b1f = b1 - (mu * inv_sigma) @ w1                     # (1, H)

    nin = w1.shape[0]
    nout = w3.shape[1]
    nout_pad = _round_up(nout, LANE)

    w1p = _pad2(w1f, nin, HPAD).astype(jnp.bfloat16)
    b1p = _pad2(b1f, 1, HPAD).astype(jnp.float32)
    w2p = _pad2(w2, HPAD, HPAD).astype(jnp.bfloat16)
    b2p = _pad2(b2, 1, HPAD).astype(jnp.float32)
    w3p = _pad2(w3, HPAD, nout_pad).astype(jnp.bfloat16)
    b3p = _pad2(b3, 1, nout_pad).astype(jnp.float32)
    return (w1p, b1p, w2p, b2p, w3p, b3p), nout


def mlp_forward(x, packed_params, nout, *, tb=256):
    w1p, b1p, w2p, b2p, w3p, b3p = packed_params
    B, nin = x.shape
    nout_pad = w3p.shape[1]

    # Batch tile: multiple of 8 sublanes, capped at tb; pad batch to a tile multiple.
    tb = min(tb, _round_up(B, 8))
    b_pad = _round_up(B, tb)
    if b_pad != B:
        x = jnp.pad(x, ((0, b_pad - B), (0, 0)))
    grid = (b_pad // tb,)

    resident = lambda i: (0, 0)   # weights/biases: DMA'd once, resident across the grid
    out = pl.pallas_call(
        mlp_kernel,
        out_shape=jax.ShapeDtypeStruct((b_pad, nout_pad), jnp.float32),
        grid=grid,
        in_specs=[
            pl.BlockSpec((tb, nin), lambda i: (i, 0)),    # x: pipelined per batch tile
            pl.BlockSpec(w1p.shape, resident),
            pl.BlockSpec(b1p.shape, resident),
            pl.BlockSpec(w2p.shape, resident),
            pl.BlockSpec(b2p.shape, resident),
            pl.BlockSpec(w3p.shape, resident),
            pl.BlockSpec(b3p.shape, resident),
        ],
        out_specs=pl.BlockSpec((tb, nout_pad), lambda i: (i, 0)),
        compiler_params=pltpu.CompilerParams(
            dimension_semantics=("parallel",)),           # batch tiles across TCs on v7x
    )(x, w1p, b1p, w2p, b2p, w3p, b3p)
    return out[:B, :nout]


def init_params(key, nin, nout):
    # nn.Linear-like uniform init; weights stored [in, out] so y = x @ W + b == F.linear.
    ks = jax.random.split(key, 6)

    def linear(kw, kb, fan_in, fan_out):
        bound = 1.0 / np.sqrt(fan_in)
        w = jax.random.uniform(kw, (fan_in, fan_out), jnp.float32, -bound, bound)
        b = jax.random.uniform(kb, (1, fan_out), jnp.float32, -bound, bound)
        return w, b

    w1, b1 = linear(ks[0], ks[1], nin, HIDDEN)
    w2, b2 = linear(ks[2], ks[3], HIDDEN, HIDDEN)
    w3, b3 = linear(ks[4], ks[5], HIDDEN, nout)
    return w1, b1, w2, b2, w3, b3


def normalize_stats(x_train):
    # Matches MLP.normalize: mean/std over batch axis; guard tiny sigma.
    mu = jnp.mean(x_train, axis=0, keepdims=True)
    sigma = jnp.std(x_train, axis=0, keepdims=True)
    sigma = jnp.where(sigma < 1e-12, 1.0, sigma)
    return mu, sigma


def _reference(x, mu, sigma, w1, b1, w2, b2, w3, b3):
    xn = (x - mu) / sigma
    h = jax.nn.sigmoid(xn @ w1 + b1)
    h = jax.nn.sigmoid(h @ w2 + b2)
    return h @ w3 + b3


if __name__ == "__main__":
    key = jax.random.PRNGKey(0)
    k_data, k_x, k_x2, k_params = jax.random.split(key, 4)

    nin, nout, batch = 5, 1, 8  # fish-weight style: 5 features -> 1 target

    X_train = jax.random.normal(k_data, (64, nin), jnp.float32) * 3.0 + 1.0
    x = jax.random.normal(k_x, (batch, nin), jnp.float32)

    mu, sigma = normalize_stats(X_train)
    w1, b1, w2, b2, w3, b3 = init_params(k_params, nin, nout)
    packed, nout_logical = prepare_params(mu, sigma, w1, b1, w2, b2, w3, b3)

    out = mlp_forward(x, packed, nout_logical)
    out = jax.block_until_ready(out)

    ref = _reference(x, mu, sigma, w1, b1, w2, b2, w3, b3)
    assert out.shape == (batch, nout)
    # bf16 MXU operands -> compare against f32 reference with loosened tolerance.
    np.testing.assert_allclose(np.asarray(out), np.asarray(ref), rtol=1e-2, atol=1e-2)

    # Second check: non-multiple batch with tb=8 exercises the grid + batch padding path.
    x2 = jax.random.normal(k_x2, (37, nin), jnp.float32)
    out2 = jax.block_until_ready(mlp_forward(x2, packed, nout_logical, tb=8))
    ref2 = _reference(x2, mu, sigma, w1, b1, w2, b2, w3, b3)
    np.testing.assert_allclose(np.asarray(out2), np.asarray(ref2), rtol=1e-2, atol=1e-2)

    print("KERNEL_OK")
</pallas_src>

<mosaic_0001>
module attributes {stable_mosaic.version = 11 : i64} {
  func.func @mlp_kernel(%arg0: i32, %arg1: memref<8x5xf32, #tpu.memory_space<vmem>>, %arg2: memref<5x384xbf16, #tpu.memory_space<vmem>>, %arg3: memref<1x384xf32, #tpu.memory_space<vmem>>, %arg4: memref<384x384xbf16, #tpu.memory_space<vmem>>, %arg5: memref<1x384xf32, #tpu.memory_space<vmem>>, %arg6: memref<384x128xbf16, #tpu.memory_space<vmem>>, %arg7: memref<1x128xf32, #tpu.memory_space<vmem>>, %arg8: memref<8x128xf32, #tpu.memory_space<vmem>>) attributes {dimension_semantics = [#tpu.dimension_semantics<parallel>], iteration_bounds = array<i64: 1>, scalar_prefetch = 0 : i64, scratch_operands = 0 : i64, tpu.core_type = #tpu.core_type<tc>, window_params = [{transform_indices = @transform_0, window_bounds = array<i64: 8, 5>}, {pipeline_mode = #tpu.pipeline_mode<synchronous>, transform_indices = @transform_1, window_bounds = array<i64: 5, 384>}, {pipeline_mode = #tpu.pipeline_mode<synchronous>, transform_indices = @transform_2, window_bounds = array<i64: 1, 384>}, {pipeline_mode = #tpu.pipeline_mode<synchronous>, transform_indices = @transform_3, window_bounds = array<i64: 384, 384>}, {pipeline_mode = #tpu.pipeline_mode<synchronous>, transform_indices = @transform_4, window_bounds = array<i64: 1, 384>}, {pipeline_mode = #tpu.pipeline_mode<synchronous>, transform_indices = @transform_5, window_bounds = array<i64: 384, 128>}, {pipeline_mode = #tpu.pipeline_mode<synchronous>, transform_indices = @transform_6, window_bounds = array<i64: 1, 128>}, {transform_indices = @transform_7, window_bounds = array<i64: 8, 128>}]} {
    %c0 = arith.constant 0 : index
    %c0_0 = arith.constant 0 : index
    %0 = vector.load %arg1[%c0, %c0_0] : memref<8x5xf32, #tpu.memory_space<vmem>>, vector<8x5xf32>
    %1 = arith.truncf %0 : vector<8x5xf32> to vector<8x5xbf16>
    %c0_1 = arith.constant 0 : index
    %c0_2 = arith.constant 0 : index
    %2 = vector.load %arg2[%c0_1, %c0_2] : memref<5x384xbf16, #tpu.memory_space<vmem>>, vector<5x384xbf16>
    %cst = arith.constant dense<0.000000e+00> : vector<8x384xf32>
    %3 = tpu.matmul %1, %2, %cst {dimension_numbers = #tpu.dot_dimension_numbers<[1], [0], [0], [1], [0, 0, 1, 1], [], []>} : vector<8x5xbf16>, vector<5x384xbf16>, vector<8x384xf32> -> vector<8x384xf32>
    %c0_3 = arith.constant 0 : index
    %c0_4 = arith.constant 0 : index
    %4 = vector.load %arg3[%c0_3, %c0_4] : memref<1x384xf32, #tpu.memory_space<vmem>>, vector<1x384xf32>
    %5 = vector.broadcast %4 : vector<1x384xf32> to vector<8x384xf32>
    %6 = arith.addf %3, %5 : vector<8x384xf32>
    %7 = arith.negf %6 : vector<8x384xf32>
    %8 = math.exp %7 : vector<8x384xf32>
    %cst_5 = arith.constant 1.000000e+00 : f32
    %9 = vector.broadcast %cst_5 : f32 to vector<8x384xf32>
    %10 = arith.addf %9, %8 : vector<8x384xf32>
    %11 = arith.divf %9, %10 : vector<8x384xf32>
    %12 = arith.truncf %11 : vector<8x384xf32> to vector<8x384xbf16>
    %c0_6 = arith.constant 0 : index
    %c0_7 = arith.constant 0 : index
    %13 = vector.load %arg4[%c0_6, %c0_7] : memref<384x384xbf16, #tpu.memory_space<vmem>>, vector<384x384xbf16>
    %cst_8 = arith.constant dense<0.000000e+00> : vector<8x384xf32>
    %14 = tpu.matmul %12, %13, %cst_8 {dimension_numbers = #tpu.dot_dimension_numbers<[1], [0], [0], [1], [0, 0, 1, 1], [], []>} : vector<8x384xbf16>, vector<384x384xbf16>, vector<8x384xf32> -> vector<8x384xf32>
    %c0_9 = arith.constant 0 : index
    %c0_10 = arith.constant 0 : index
    %15 = vector.load %arg5[%c0_9, %c0_10] : memref<1x384xf32, #tpu.memory_space<vmem>>, vector<1x384xf32>
    %16 = vector.broadcast %15 : vector<1x384xf32> to vector<8x384xf32>
    %17 = arith.addf %14, %16 : vector<8x384xf32>
    %18 = arith.negf %17 : vector<8x384xf32>
    %19 = math.exp %18 : vector<8x384xf32>
    %cst_11 = arith.constant 1.000000e+00 : f32
    %20 = vector.broadcast %cst_11 : f32 to vector<8x384xf32>
    %21 = arith.addf %20, %19 : vector<8x384xf32>
    %22 = arith.divf %20, %21 : vector<8x384xf32>
    %23 = arith.truncf %22 : vector<8x384xf32> to vector<8x384xbf16>
    %c0_12 = arith.constant 0 : index
    %c0_13 = arith.constant 0 : index
    %24 = vector.load %arg6[%c0_12, %c0_13] : memref<384x128xbf16, #tpu.memory_space<vmem>>, vector<384x128xbf16>
    %cst_14 = arith.constant dense<0.000000e+00> : vector<8x128xf32>
    %25 = tpu.matmul %23, %24, %cst_14 {dimension_numbers = #tpu.dot_dimension_numbers<[1], [0], [0], [1], [0, 0, 1, 1], [], []>} : vector<8x384xbf16>, vector<384x128xbf16>, vector<8x128xf32> -> vector<8x128xf32>
    %c0_15 = arith.constant 0 : index
    %c0_16 = arith.constant 0 : index
    %26 = vector.load %arg7[%c0_15, %c0_16] : memref<1x128xf32, #tpu.memory_space<vmem>>, vector<1x128xf32>
    %27 = vector.broadcast %26 : vector<1x128xf32> to vector<8x128xf32>
    %28 = arith.addf %25, %27 : vector<8x128xf32>
    %c0_17 = arith.constant 0 : index
    %c0_18 = arith.constant 0 : index
    %29 = vector.load %arg8[%c0_17, %c0_18] : memref<8x128xf32, #tpu.memory_space<vmem>>, vector<8x128xf32>
    tpu.vector_store %arg8[%c0_17, %c0_18], %28 {strides = array<i32>} : memref<8x128xf32, #tpu.memory_space<vmem>>, vector<8x128xf32>,
    return
  }
  func.func @transform_0(%arg0: i32) -> (i32, i32) {
    %c0_i32 = arith.constant 0 : i32
    %c0_i32_0 = arith.constant 0 : i32
    return %arg0, %c0_i32 : i32, i32
  }
  func.func @transform_1(%arg0: i32) -> (i32, i32) {
    %c0_i32 = arith.constant 0 : i32
    %c0_i32_0 = arith.constant 0 : i32
    %c0_i32_1 = arith.constant 0 : i32
    return %c0_i32, %c0_i32_0 : i32, i32
  }
  func.func @transform_2(%arg0: i32) -> (i32, i32) {
    %c0_i32 = arith.constant 0 : i32
    %c0_i32_0 = arith.constant 0 : i32
    %c0_i32_1 = arith.constant 0 : i32
    return %c0_i32, %c0_i32_0 : i32, i32
  }
  func.func @transform_3(%arg0: i32) -> (i32, i32) {
    %c0_i32 = arith.constant 0 : i32
    %c0_i32_0 = arith.constant 0 : i32
    %c0_i32_1 = arith.constant 0 : i32
    return %c0_i32, %c0_i32_0 : i32, i32
  }
  func.func @transform_4(%arg0: i32) -> (i32, i32) {
    %c0_i32 = arith.constant 0 : i32
    %c0_i32_0 = arith.constant 0 : i32
    %c0_i32_1 = arith.constant 0 : i32
    return %c0_i32, %c0_i32_0 : i32, i32
  }
  func.func @transform_5(%arg0: i32) -> (i32, i32) {
    %c0_i32 = arith.constant 0 : i32
    %c0_i32_0 = arith.constant 0 : i32
    %c0_i32_1 = arith.constant 0 : i32
    return %c0_i32, %c0_i32_0 : i32, i32
  }
  func.func @transform_6(%arg0: i32) -> (i32, i32) {
    %c0_i32 = arith.constant 0 : i32
    %c0_i32_0 = arith.constant 0 : i32
    %c0_i32_1 = arith.constant 0 : i32
    return %c0_i32, %c0_i32_0 : i32, i32
  }
  func.func @transform_7(%arg0: i32) -> (i32, i32) {
    %c0_i32 = arith.constant 0 : i32
    %c0_i32_0 = arith.constant 0 : i32
    return %arg0, %c0_i32 : i32, i32
  }
}

</mosaic_0001>

<llo_original>
// kernel: tpu_custom_call.1
$region0: #{tpu_custom_call.1}
  #allocation0 [shape = 'u32[]', space=smem, size = 0x4, offset = 0x4, fixed_abs, tag = 'smem constant byte address 0x4 - core index']
  #allocation1 [shape = 'u32[72,128]{1,0:T(1,128)}', space=vmem, size = 0x9000, scoped, tag = 'internal scratch']
  %s0 = inlined_call_operand.hbm [shape: f32[8,5], index: 0, kind: input, shape index: {}]
  %s1 = inlined_call_operand.hbm [shape: bf16[5,384], index: 1, kind: input, shape index: {}]
  %s2 = inlined_call_operand.hbm [shape: f32[1,384], index: 2, kind: input, shape index: {}]
  %s3 = inlined_call_operand.hbm [shape: bf16[384,384], index: 3, kind: input, shape index: {}]
  %s4 = inlined_call_operand.vmem [shape: f32[1,384], index: 4, kind: input, shape index: {}]
  %s5 = inlined_call_operand.hbm [shape: bf16[384,128], index: 5, kind: input, shape index: {}]
  %s6 = inlined_call_operand.vmem [shape: f32[1,128], index: 6, kind: input, shape index: {}]
  %s7 = inlined_call_operand.hbm [shape: f32[8,128], index: 7, kind: output, shape index: {}]
  %s8 = sld [smem:[#allocation0]]
  $region58: #{tpu_custom_call.1} parent=0
    _
  %s10 = ssub.s32 1, %s8
  %s11 = scalar_select 0, %s10, %s8
  $region1: #{tpu_custom_call.1} parent=0
    #allocation2 [shape = 'u8[4096]{0}', space=vmem, size = 0x1000, scoped, tag = 'input window, operand 0, single buffered']
    #allocation3 [shape = 's32[1]{0}', space=sflag, size = 0x4, scoped, tag = 'scoped memory for tpu_custom_call.1']
    #allocation4 [shape = 's32[1]{0}', space=sflag, size = 0x4, scoped, tag = 'scoped memory for tpu_custom_call.1']
    #allocation5 [shape = 'u8[6144]{0}', space=vmem, size = 0x1800, scoped, tag = 'input window, operand 1, single buffered']
    #allocation6 [shape = 's32[1]{0}', space=sflag, size = 0x4, scoped, tag = 'scoped memory for tpu_custom_call.1']
    #allocation7 [shape = 'u8[1536]{0}', space=vmem, size = 0x800, scoped, tag = 'input window, operand 2, single buffered']
    #allocation8 [shape = 'u8[294912]{0}', space=vmem, size = 0x48000, scoped, tag = 'input window, operand 3, single buffered']
    #allocation9 [shape = 's32[1]{0}', space=sflag, size = 0x4, scoped, tag = 'scoped memory for tpu_custom_call.1']
    #allocation10 [shape = 'u8[98304]{0}', space=vmem, size = 0x18000, scoped, tag = 'input window, operand 5, single buffered']
    #allocation11 [shape = 'u8[4096]{0}', space=vmem, size = 0x1000, scoped, tag = 'output window, operand 0, single buffered']
    %12 = vsyncpa [#allocation3], 0
    %13 = vsyncpa [#allocation6], 0
    %14 = vsyncpa [#allocation9], 0
    %15 = vsyncpa [#allocation4], 0
    // Predicated region
    $region2: #{tpu_custom_call.1} parent=1 // pred_check
      _
    $region3: #{tpu_custom_call.1} parent=1 // pred_check_branch
      %17 = sbr.rel (0) target = $region5
    $region4: #{tpu_custom_call.1} parent=1 // pred_region
      %19 = vsyncadd [#allocation3], 0
      %s21 = sshll.u32 %s0, 4
      %s22 = int_to_ptr.hbm [resolvable:$true] %s21
      %s23 = sshll.u32 [#allocation2], 4
      %s24 = int_to_ptr.vmem [resolvable:$true] %s23
      %26 = dma.hbm_to_vmem [thread:$0]  %s22, 128, %s24, [#allocation3]
    $region5: #{tpu_custom_call.1} parent=1 // pred_fallthru
      _
    // Predicated region
    $region6: #{tpu_custom_call.1} parent=1 // pred_check
      _
    $region7: #{tpu_custom_call.1} parent=1 // pred_check_branch
      %28 = sbr.rel (0) target = $region9
    $region8: #{tpu_custom_call.1} parent=1 // pred_region
      %30 = vsyncadd [#allocation6], 0
      %s32 = sshll.u32 %s1, 4
      %s33 = int_to_ptr.hbm [resolvable:$true] %s32
      %s34 = sshll.u32 [#allocation5], 4
      %s35 = int_to_ptr.vmem [resolvable:$true] %s34
      %37 = dma.hbm_to_vmem [thread:$0]  %s33, 192, %s35, [#allocation6]
    $region9: #{tpu_custom_call.1} parent=1 // pred_fallthru
      _
    // Predicated region
    $region10: #{tpu_custom_call.1} parent=1 // pred_check
      _
    $region11: #{tpu_custom_call.1} parent=1 // pred_check_branch
      %39 = sbr.rel (0) target = $region13
    $region12: #{tpu_custom_call.1} parent=1 // pred_region
      %41 = vsyncadd [#allocation6], 0
      %s43 = sshll.u32 %s2, 4
      %s44 = int_to_ptr.hbm [resolvable:$true] %s43
      %s45 = sshll.u32 [#allocation7], 4
      %s46 = int_to_ptr.vmem [resolvable:$true] %s45
      %48 = dma.hbm_to_vmem [thread:$0]  %s44, 48, %s46, [#allocation6]
    $region13: #{tpu_custom_call.1} parent=1 // pred_fallthru
      _
    // Predicated region
    $region14: #{tpu_custom_call.1} parent=1 // pred_check
      _
    $region15: #{tpu_custom_call.1} parent=1 // pred_check_branch
      %50 = sbr.rel (0) target = $region17
    $region16: #{tpu_custom_call.1} parent=1 // pred_region
      %52 = vsyncadd [#allocation9], 0
      %s53 = sshll.u32 %s3, 4
      %s54 = int_to_ptr.hbm [resolvable:$true] %s53
      %s55 = sshll.u32 [#allocation8], 4
      %s56 = int_to_ptr.vmem [resolvable:$true] %s55
      %61 = dma.hbm_to_vmem [thread:$0]  %s54, 9216, %s56, [#allocation9], 192, 192, 12
    $region17: #{tpu_custom_call.1} parent=1 // pred_fallthru
      _
    // Predicated region
    $region18: #{tpu_custom_call.1} parent=1 // pred_check
      _
    $region19: #{tpu_custom_call.1} parent=1 // pred_check_branch
      %63 = sbr.rel (0) target = $region21
    $region20: #{tpu_custom_call.1} parent=1 // pred_region
      _
    $region21: #{tpu_custom_call.1} parent=1 // pred_fallthru
      _
    // Predicated region
    $region22: #{tpu_custom_call.1} parent=1 // pred_check
      _
    $region23: #{tpu_custom_call.1} parent=1 // pred_check_branch
      %65 = sbr.rel (0) target = $region25
    $region24: #{tpu_custom_call.1} parent=1 // pred_region
      %67 = vsyncadd [#allocation9], 0
      %s68 = sshll.u32 %s5, 4
      %s69 = int_to_ptr.hbm [resolvable:$true] %s68
      %s70 = sshll.u32 [#allocation10], 4
      %s71 = int_to_ptr.vmem [resolvable:$true] %s70
      %76 = dma.hbm_to_vmem [thread:$0]  %s69, 3072, %s71, [#allocation9], 64, 64, 4
    $region25: #{tpu_custom_call.1} parent=1 // pred_fallthru
      _
    // Predicated region
    $region26: #{tpu_custom_call.1} parent=1 // pred_check
      _
    $region27: #{tpu_custom_call.1} parent=1 // pred_check_branch
      %78 = sbr.rel (0) target = $region29
    $region28: #{tpu_custom_call.1} parent=1 // pred_region
      _
    $region29: #{tpu_custom_call.1} parent=1 // pred_fallthru
      _
    // Predicated region
    $region30: #{tpu_custom_call.1} parent=1 // pred_check
      _
    $region31: #{tpu_custom_call.1} parent=1 // pred_check_branch
      %80 = sbr.rel (0) target = $region33
    $region32: #{tpu_custom_call.1} parent=1 // pred_region
      %82 = dma.done [#allocation3], 128
    $region33: #{tpu_custom_call.1} parent=1 // pred_fallthru
      _
    // Predicated region
    $region34: #{tpu_custom_call.1} parent=1 // pred_check
      _
    $region35: #{tpu_custom_call.1} parent=1 // pred_check_branch
      %84 = sbr.rel (0) target = $region37
    $region36: #{tpu_custom_call.1} parent=1 // pred_region
      %86 = dma.done [#allocation6], 192
    $region37: #{tpu_custom_call.1} parent=1 // pred_fallthru
      _
    // Predicated region
    $region38: #{tpu_custom_call.1} parent=1 // pred_check
      _
    $region39: #{tpu_custom_call.1} parent=1 // pred_check_branch
      %88 = sbr.rel (0) target = $region41
    $region40: #{tpu_custom_call.1} parent=1 // pred_region
      %90 = dma.done [#allocation6], 48
    $region41: #{tpu_custom_call.1} parent=1 // pred_fallthru
      _
    // Predicated region
    $region42: #{tpu_custom_call.1} parent=1 // pred_check
      _
    $region43: #{tpu_custom_call.1} parent=1 // pred_check_branch
      %92 = sbr.rel (0) target = $region45
    $region44: #{tpu_custom_call.1} parent=1 // pred_region
      %94 = dma.done [#allocation9], 9216
    $region45: #{tpu_custom_call.1} parent=1 // pred_fallthru
      _
    // Predicated region
    $region46: #{tpu_custom_call.1} parent=1 // pred_check
      _
    $region47: #{tpu_custom_call.1} parent=1 // pred_check_branch
      %96 = sbr.rel (0) target = $region49
    $region48: #{tpu_custom_call.1} parent=1 // pred_region
      %98 = dma.done [#allocation9], 3072
    $region49: #{tpu_custom_call.1} parent=1 // pred_fallthru
      _
    %v100 = vld [vmem:[#allocation2] sm:$0xff]
    %v101 = vpack.c.bf16 %v100, %v100
    %v102 = vld [vmem:[#allocation5] sm:$0x77]
    %v103 = vld [vmem:[#allocation5 + $0x8] sm:$0x7]
    %v104 = vld [vmem:[#allocation7] sm:$0x7]
    %v106 = vperm.slane %v104, 0
    %v107 = vperm.slane %v104, 1
    %v108 = vperm.slane %v104, 2
    %v114 = vunpack.c.l.b16 %v102
    %v115 = vunpack.c.h.b16 %v102
    %v116 = vunpack.c.l.b16 %v103
    %v117 = vpack.c.b16 %v114, %v114
    %v118 = vpack.c.b16 %v115, %v115
    %v119 = vpack.c.b16 %v116, %v116
    %vm120 = vcmask 39936
    %v122 = vsel %vm120, %v101, 0
    %vm124 = vcmask 1041408
    %vm125 = vcmask 1042432
    %v126 = vsel %vm124, 4294967295, 65535
    %v127 = vsel %vm125, %v126, 0
    %v129 = vand.u32 %v117, %v127
    %v132 = vand.u32 %v118, %v127
    %v135 = vand.u32 %v119, %v127
    %137 = vmatpush.bf16.msra.mxu0 0
    %138 = vmatpush.bf16.msra.mxu0 0
    %139 = vmatpush.bf16.msra.mxu0 0
    %140 = vmatpush.bf16.msra.mxu0 0
    %141 = vmatpush.bf16.msra.mxu0 0
    %142 = vmatpush.bf16.msra.mxu0 0
    %143 = vmatpush.bf16.msra.mxu0 0
    %144 = vmatpush.bf16.msra.mxu0 %v129
    %145 = vmatmul.bf16.gmra.mxu0 %v122
    %v146 = vpop.f32.mrf.mxu0
    %v147 = vadd.f32 %v106, %v146
    %v148 = vpop.f32.mrf.mxu0
    %149 = vdwg.mxu0
    %150 = vmatpush.bf16.msra.mxu0 0
    %151 = vmatpush.bf16.msra.mxu0 0
    %152 = vmatpush.bf16.msra.mxu0 0
    %153 = vmatpush.bf16.msra.mxu0 0
    %154 = vmatpush.bf16.msra.mxu0 0
    %155 = vmatpush.bf16.msra.mxu0 0
    %156 = vmatpush.bf16.msra.mxu0 0
    %157 = vmatpush.bf16.msra.mxu0 %v132
    %158 = vmatmul.bf16.gmra.mxu0 %v122
    %v159 = vpop.f32.mrf.mxu0
    %v160 = vadd.f32 %v107, %v159
    %v161 = vpop.f32.mrf.mxu0
    %162 = vdwg.mxu0
    %163 = vmatpush.bf16.msra.mxu0 0
    %164 = vmatpush.bf16.msra.mxu0 0
    %165 = vmatpush.bf16.msra.mxu0 0
    %166 = vmatpush.bf16.msra.mxu0 0
    %167 = vmatpush.bf16.msra.mxu0 0
    %168 = vmatpush.bf16.msra.mxu0 0
    %169 = vmatpush.bf16.msra.mxu0 0
    %170 = vmatpush.bf16.msra.mxu0 %v135
    %171 = vmatmul.bf16.gmra.mxu0 %v122
    %v172 = vpop.f32.mrf.mxu0
    %v173 = vadd.f32 %v108, %v172
    %v174 = vpop.f32.mrf.mxu0
    %175 = vdwg.mxu0
    %v176 = vxor.u32 %v147, 2147483648
    %v177 = vxor.u32 %v160, 2147483648
    %v178 = vxor.u32 %v173, 2147483648
    %v179 = vmul.f32 %v176, 1.442695
    %v180 = vpow.pop %v179
    %v181 = vmul.f32 %v177, 1.442695
    %v182 = vpow.pop %v181
    %v183 = vmul.f32 %v178, 1.442695
    %v184 = vpow.pop %v183
    %v185 = vadd.f32 %v180, 1.0
    %v186 = vadd.f32 %v182, 1.0
    %v187 = vadd.f32 %v184, 1.0
    %v188 = vrcp.pop %v185
    %v189 = vmul.f32 %v185, %v188
    %v190 = vsub.f32 1.0, %v189
    %v191 = vmul.f32 %v188, %v190
    %v192 = vadd.f32 %v188, %v191
    %vm193 = vweird.f32 %v185
    %vm194 = vweird.f32 %v188
    %vm195 = vmor %vm193, %vm194
    %v196 = vsel %vm195, %v188, %v192
    %v197 = vand.u32 2147483647, %v185
    %vm198 = vcmp.eq.f32.partialorder %v197, 8.507059e+37
    %v199 = vand.u32 %v185, 2147483648
    %v200 = vor.u32 1.1754944e-38, %v199
    %v201 = vsel %vm198, %v200, %v196
    %v202 = vmul.f32 1.0, %v201
    %v203 = vrcp.pop %v186
    %v204 = vmul.f32 %v186, %v203
    %v205 = vsub.f32 1.0, %v204
    %v206 = vmul.f32 %v203, %v205
    %v207 = vadd.f32 %v203, %v206
    %vm208 = vweird.f32 %v186
    %vm209 = vweird.f32 %v203
    %vm210 = vmor %vm208, %vm209
    %v211 = vsel %vm210, %v203, %v207
    %v212 = vand.u32 2147483647, %v186
    %vm213 = vcmp.eq.f32.partialorder %v212, 8.507059e+37
    %v214 = vand.u32 %v186, 2147483648
    %v215 = vor.u32 1.1754944e-38, %v214
    %v216 = vsel %vm213, %v215, %v211
    %v217 = vmul.f32 1.0, %v216
    %v218 = vrcp.pop %v187
    %v219 = vmul.f32 %v187, %v218
    %v220 = vsub.f32 1.0, %v219
    %v221 = vmul.f32 %v218, %v220
    %v222 = vadd.f32 %v218, %v221
    %vm223 = vweird.f32 %v187
    %vm224 = vweird.f32 %v218
    %vm225 = vmor %vm223, %vm224
    %v226 = vsel %vm225, %v218, %v222
    %v227 = vand.u32 2147483647, %v187
    %vm228 = vcmp.eq.f32.partialorder %v227, 8.507059e+37
    %v229 = vand.u32 %v187, 2147483648
    %v230 = vor.u32 1.1754944e-38, %v229
    %v231 = vsel %vm228, %v230, %v226
    %v232 = vmul.f32 1.0, %v231
    %v233 = vpack.c.bf16 %v202, %v202
    %v234 = vpack.c.bf16 %v217, %v217
    %v235 = vpack.c.bf16 %v232, %v232
    %v236 = vld [vmem:[#allocation8] sm:$0xff]
    %v237 = vld [vmem:[#allocation8 + $0x8] sm:$0xf]
    %v238 = vld [vmem:[#allocation8 + $0xc] sm:$0xff]
    %v239 = vld [vmem:[#allocation8 + $0x14] sm:$0xf]
    %v240 = vld [vmem:[#allocation8 + $0x18] sm:$0xff]
    %v241 = vld [vmem:[#allocation8 + $0x20] sm:$0xf]
    %v242 = vld [vmem:[#allocation8 + $0x24] sm:$0xff]
    %v243 = vld [vmem:[#allocation8 + $0x2c] sm:$0xf]
    %v244 = vld [vmem:[#allocation8 + $0x30] sm:$0xff]
    %v245 = vld [vmem:[#allocation8 + $0x38] sm:$0xf]
    %v246 = vld [vmem:[#allocation8 + $0x3c] sm:$0xff]
    %v247 = vld [vmem:[#allocation8 + $0x44] sm:$0xf]
    %v248 = vld [vmem:[#allocation8 + $0x48] sm:$0xff]
    %v249 = vld [vmem:[#allocation8 + $0x50] sm:$0xf]
    %v250 = vld [vmem:[#allocation8 + $0x54] sm:$0xff]
    %v251 = vld [vmem:[#allocation8 + $0x5c] sm:$0xf]
    %v252 = vld [vmem:[#allocation8 + $0x60] sm:$0xff]
    %v253 = vld [vmem:[#allocation8 + $0x68] sm:$0xf]
    %v254 = vld [vmem:[#allocation8 + $0x6c] sm:$0xff]
    %v255 = vld [vmem:[#allocation8 + $0x74] sm:$0xf]
    %v256 = vld [vmem:[#allocation8 + $0x78] sm:$0xff]
    %v257 = vld [vmem:[#allocation8 + $0x80] sm:$0xf]
    %v258 = vld [vmem:[#allocation8 + $0x84] sm:$0xff]
    %v259 = vld [vmem:[#allocation8 + $0x8c] sm:$0xf]
    %v260 = vld [vmem:[#allocation8 + $0x90] sm:$0xff]
    %v261 = vld [vmem:[#allocation8 + $0x98] sm:$0xf]
    %v262 = vld [vmem:[#allocation8 + $0x9c] sm:$0xff]
    %v263 = vld [vmem:[#allocation8 + $0xa4] sm:$0xf]
    %v264 = vld [vmem:[#allocation8 + $0xa8] sm:$0xff]
    %v265 = vld [vmem:[#allocation8 + $0xb0] sm:$0xf]
    %v266 = vld [vmem:[#allocation8 + $0xb4] sm:$0xff]
    %v267 = vld [vmem:[#allocation8 + $0xbc] sm:$0xf]
    %v268 = vld [vmem:[#allocation8 + $0xc0] sm:$0xff]
    %v269 = vld [vmem:[#allocation8 + $0xc8] sm:$0xf]
    %v270 = vld [vmem:[#allocation8 + $0xcc] sm:$0xff]
    %v271 = vld [vmem:[#allocation8 + $0xd4] sm:$0xf]
    %v272 = vld [vmem:[#allocation8 + $0xd8] sm:$0xff]
    %v273 = vld [vmem:[#allocation8 + $0xe0] sm:$0xf]
    %v274 = vld [vmem:[#allocation8 + $0xe4] sm:$0xff]
    %v275 = vld [vmem:[#allocation8 + $0xec] sm:$0xf]
    %v276 = vld [vmem:[#allocation8 + $0xf0] sm:$0xff]
    %v277 = vld [vmem:[#allocation8 + $0xf8] sm:$0xf]
    %v278 = vld [vmem:[#allocation8 + $0xfc] sm:$0xff]
    %v279 = vld [vmem:[#allocation8 + $0x104] sm:$0xf]
    %v280 = vld [vmem:[#allocation8 + $0x108] sm:$0xff]
    %v281 = vld [vmem:[#allocation8 + $0x110] sm:$0xf]
    %v282 = vld [vmem:[#allocation8 + $0x114] sm:$0xff]
    %v283 = vld [vmem:[#allocation8 + $0x11c] sm:$0xf]
    %v284 = vld [vmem:[#allocation8 + $0x120] sm:$0xff]
    %v285 = vld [vmem:[#allocation8 + $0x128] sm:$0xf]
    %v286 = vld [vmem:[#allocation8 + $0x12c] sm:$0xff]
    %v287 = vld [vmem:[#allocation8 + $0x134] sm:$0xf]
    %v288 = vld [vmem:[#allocation8 + $0x138] sm:$0xff]
    %v289 = vld [vmem:[#allocation8 + $0x140] sm:$0xf]
    %v290 = vld [vmem:[#allocation8 + $0x144] sm:$0xff]
    %v291 = vld [vmem:[#allocation8 + $0x14c] sm:$0xf]
    %v292 = vld [vmem:[#allocation8 + $0x150] sm:$0xff]
    %v293 = vld [vmem:[#allocation8 + $0x158] sm:$0xf]
    %v294 = vld [vmem:[#allocation8 + $0x15c] sm:$0xff]
    %v295 = vld [vmem:[#allocation8 + $0x164] sm:$0xf]
    %v296 = vld [vmem:[#allocation8 + $0x168] sm:$0xff]
    %v297 = vld [vmem:[#allocation8 + $0x170] sm:$0xf]
    %v298 = vld [vmem:[#allocation8 + $0x174] sm:$0xff]
    %v299 = vld [vmem:[#allocation8 + $0x17c] sm:$0xf]
    %v300 = vld [vmem:[#allocation8 + $0x180] sm:$0xff]
    %v301 = vld [vmem:[#allocation8 + $0x188] sm:$0xf]
    %v302 = vld [vmem:[#allocation8 + $0x18c] sm:$0xff]
    %v303 = vld [vmem:[#allocation8 + $0x194] sm:$0xf]
    %v304 = vld [vmem:[#allocation8 + $0x198] sm:$0xff]
    %v305 = vld [vmem:[#allocation8 + $0x1a0] sm:$0xf]
    %v306 = vld [vmem:[#allocation8 + $0x1a4] sm:$0xff]
    %v307 = vld [vmem:[#allocation8 + $0x1ac] sm:$0xf]
    %v308 = vld [vmem:[#allocation8 + $0x1b0] sm:$0xff]
    %v309 = vld [vmem:[#allocation8 + $0x1b8] sm:$0xf]
    %v310 = vld [vmem:[#allocation8 + $0x1bc] sm:$0xff]
    %v311 = vld [vmem:[#allocation8 + $0x1c4] sm:$0xf]
    %v312 = vld [vmem:[#allocation8 + $0x1c8] sm:$0xff]
    %v313 = vld [vmem:[#allocation8 + $0x1d0] sm:$0xf]
    %v314 = vld [vmem:[#allocation8 + $0x1d4] sm:$0xff]
    %v315 = vld [vmem:[#allocation8 + $0x1dc] sm:$0xf]
    %v316 = vld [vmem:[#allocation8 + $0x1e0] sm:$0xff]
    %v317 = vld [vmem:[#allocation8 + $0x1e8] sm:$0xf]
    %v318 = vld [vmem:[#allocation8 + $0x1ec] sm:$0xff]
    %v319 = vld [vmem:[#allocation8 + $0x1f4] sm:$0xf]
    %v320 = vld [vmem:[#allocation8 + $0x1f8] sm:$0xff]
    %v321 = vld [vmem:[#allocation8 + $0x200] sm:$0xf]
    %v322 = vld [vmem:[#allocation8 + $0x204] sm:$0xff]
    %v323 = vld [vmem:[#allocation8 + $0x20c] sm:$0xf]
    %v324 = vld [vmem:[#allocation8 + $0x210] sm:$0xff]
    %v325 = vld [vmem:[#allocation8 + $0x218] sm:$0xf]
    %v326 = vld [vmem:[#allocation8 + $0x21c] sm:$0xff]
    %v327 = vld [vmem:[#allocation8 + $0x224] sm:$0xf]
    %v328 = vld [vmem:[#allocation8 + $0x228] sm:$0xff]
    %v329 = vld [vmem:[#allocation8 + $0x230] sm:$0xf]
    %v330 = vld [vmem:[#allocation8 + $0x234] sm:$0xff]
    %v331 = vld [vmem:[#allocation8 + $0x23c] sm:$0xf]
    %v332 = vld [vmem:[%s4] sm:$0x7]
    %v334 = vperm.slane %v332, 0
    %v335 = vperm.slane %v332, 1
    %v336 = vperm.slane %v332, 2
    %v436 = vunpack.c.l.b16 %v236
    %v437 = vunpack.c.h.b16 %v236
    %v438 = vunpack.c.l.b16 %v237
    %v439 = vunpack.c.l.b16 %v238
    %v440 = vunpack.c.h.b16 %v238
    %v441 = vunpack.c.l.b16 %v239
    %v442 = vunpack.c.l.b16 %v240
    %v443 = vunpack.c.h.b16 %v240
    %v444 = vunpack.c.l.b16 %v241
    %v445 = vunpack.c.l.b16 %v242
    %v446 = vunpack.c.h.b16 %v242
    %v447 = vunpack.c.l.b16 %v243
    %v448 = vunpack.c.l.b16 %v244
    %v449 = vunpack.c.h.b16 %v244
    %v450 = vunpack.c.l.b16 %v245
    %v451 = vunpack.c.l.b16 %v246
    %v452 = vunpack.c.h.b16 %v246
    %v453 = vunpack.c.l.b16 %v247
    %v454 = vunpack.c.l.b16 %v248
    %v455 = vunpack.c.h.b16 %v248
    %v456 = vunpack.c.l.b16 %v249
    %v457 = vunpack.c.l.b16 %v250
    %v458 = vunpack.c.h.b16 %v250
    %v459 = vunpack.c.l.b16 %v251
    %v460 = vunpack.c.l.b16 %v252
    %v461 = vunpack.c.h.b16 %v252
    %v462 = vunpack.c.l.b16 %v253
    %v463 = vunpack.c.l.b16 %v254
    %v464 = vunpack.c.h.b16 %v254
    %v465 = vunpack.c.l.b16 %v255
    %v466 = vunpack.c.l.b16 %v256
    %v467 = vunpack.c.h.b16 %v256
    %v468 = vunpack.c.l.b16 %v257
    %v469 = vunpack.c.l.b16 %v258
    %v470 = vunpack.c.h.b16 %v258
    %v471 = vunpack.c.l.b16 %v259
    %v472 = vunpack.c.l.b16 %v260
    %v473 = vunpack.c.h.b16 %v260
    %v474 = vunpack.c.l.b16 %v261
    %v475 = vunpack.c.l.b16 %v262
    %v476 = vunpack.c.h.b16 %v262
    %v477 = vunpack.c.l.b16 %v263
    %v478 = vunpack.c.l.b16 %v264
    %v479 = vunpack.c.h.b16 %v264
    %v480 = vunpack.c.l.b16 %v265
    %v481 = vunpack.c.l.b16 %v266
    %v482 = vunpack.c.h.b16 %v266
    %v483 = vunpack.c.l.b16 %v267
    %v484 = vunpack.c.l.b16 %v268
    %v485 = vunpack.c.h.b16 %v268
    %v486 = vunpack.c.l.b16 %v269
    %v487 = vunpack.c.l.b16 %v270
    %v488 = vunpack.c.h.b16 %v270
    %v489 = vunpack.c.l.b16 %v271
    %v490 = vunpack.c.l.b16 %v272
    %v491 = vunpack.c.h.b16 %v272
    %v492 = vunpack.c.l.b16 %v273
    %v493 = vunpack.c.l.b16 %v274
    %v494 = vunpack.c.h.b16 %v274
    %v495 = vunpack.c.l.b16 %v275
    %v496 = vunpack.c.l.b16 %v276
    %v497 = vunpack.c.h.b16 %v276
    %v498 = vunpack.c.l.b16 %v277
    %v499 = vunpack.c.l.b16 %v278
    %v500 = vunpack.c.h.b16 %v278
    %v501 = vunpack.c.l.b16 %v279
    %v502 = vunpack.c.l.b16 %v280
    %v503 = vunpack.c.h.b16 %v280
    %v504 = vunpack.c.l.b16 %v281
    %v505 = vunpack.c.l.b16 %v282
    %v506 = vunpack.c.h.b16 %v282
    %v507 = vunpack.c.l.b16 %v283
    %v508 = vunpack.c.l.b16 %v284
    %v509 = vunpack.c.h.b16 %v284
    %v510 = vunpack.c.l.b16 %v285
    %v511 = vunpack.c.l.b16 %v286
    %v512 = vunpack.c.h.b16 %v286
    %v513 = vunpack.c.l.b16 %v287
    %v514 = vunpack.c.l.b16 %v288
    %v515 = vunpack.c.h.b16 %v288
    %v516 = vunpack.c.l.b16 %v289
    %v517 = vunpack.c.l.b16 %v290
    %v518 = vunpack.c.h.b16 %v290
    %v519 = vunpack.c.l.b16 %v291
    %v520 = vunpack.c.l.b16 %v292
    %v521 = vunpack.c.h.b16 %v292
    %v522 = vunpack.c.l.b16 %v293
    %v523 = vunpack.c.l.b16 %v294
    %v524 = vunpack.c.h.b16 %v294
    %v525 = vunpack.c.l.b16 %v295
    %v526 = vunpack.c.l.b16 %v296
    %v527 = vunpack.c.h.b16 %v296
    %v528 = vunpack.c.l.b16 %v297
    %v529 = vunpack.c.l.b16 %v298
    %v530 = vunpack.c.h.b16 %v298
    %v531 = vunpack.c.l.b16 %v299
    %v532 = vunpack.c.l.b16 %v300
    %v533 = vunpack.c.h.b16 %v300
    %v534 = vunpack.c.l.b16 %v301
    %v535 = vunpack.c.l.b16 %v302
    %v536 = vunpack.c.h.b16 %v302
    %v537 = vunpack.c.l.b16 %v303
    %v538 = vunpack.c.l.b16 %v304
    %v539 = vunpack.c.h.b16 %v304
    %v540 = vunpack.c.l.b16 %v305
    %v541 = vunpack.c.l.b16 %v306
    %v542 = vunpack.c.h.b16 %v306
    %v543 = vunpack.c.l.b16 %v307
    %v544 = vunpack.c.l.b16 %v308
    %v545 = vunpack.c.h.b16 %v308
    %v546 = vunpack.c.l.b16 %v309
    %v547 = vunpack.c.l.b16 %v310
    %v548 = vunpack.c.h.b16 %v310
    %v549 = vunpack.c.l.b16 %v311
    %v550 = vunpack.c.l.b16 %v312
    %v551 = vunpack.c.h.b16 %v312
    %v552 = vunpack.c.l.b16 %v313
    %v553 = vunpack.c.l.b16 %v314
    %v554 = vunpack.c.h.b16 %v314
    %v555 = vunpack.c.l.b16 %v315
    %v556 = vunpack.c.l.b16 %v316
    %v557 = vunpack.c.h.b16 %v316
    %v558 = vunpack.c.l.b16 %v317
    %v559 = vunpack.c.l.b16 %v318
    %v560 = vunpack.c.h.b16 %v318
    %v561 = vunpack.c.l.b16 %v319
    %v562 = vunpack.c.l.b16 %v320
    %v563 = vunpack.c.h.b16 %v320
    %v564 = vunpack.c.l.b16 %v321
    %v565 = vunpack.c.l.b16 %v322
    %v566 = vunpack.c.h.b16 %v322
    %v567 = vunpack.c.l.b16 %v323
    %v568 = vunpack.c.l.b16 %v324
    %v569 = vunpack.c.h.b16 %v324
    %v570 = vunpack.c.l.b16 %v325
    %v571 = vunpack.c.l.b16 %v326
    %v572 = vunpack.c.h.b16 %v326
    %v573 = vunpack.c.l.b16 %v327
    %v574 = vunpack.c.l.b16 %v328
    %v575 = vunpack.c.h.b16 %v328
    %v576 = vunpack.c.l.b16 %v329
    %v577 = vunpack.c.l.b16 %v330
    %v578 = vunpack.c.h.b16 %v330
    %v579 = vunpack.c.l.b16 %v331
    %v580 = vpack.c.b16 %v439, %v436
    %v581 = vpack.c.b16 %v440, %v437
    %v582 = vpack.c.b16 %v441, %v438
    %v583 = vpack.c.b16 %v445, %v442
    %v584 = vpack.c.b16 %v446, %v443
    %v585 = vpack.c.b16 %v447, %v444
    %v586 = vpack.c.b16 %v451, %v448
    %v587 = vpack.c.b16 %v452, %v449
    %v588 = vpack.c.b16 %v453, %v450
    %v589 = vpack.c.b16 %v457, %v454
    %v590 = vpack.c.b16 %v458, %v455
    %v591 = vpack.c.b16 %v459, %v456
    %v592 = vpack.c.b16 %v463, %v460
    %v593 = vpack.c.b16 %v464, %v461
    %v594 = vpack.c.b16 %v465, %v462
    %v595 = vpack.c.b16 %v469, %v466
    %v596 = vpack.c.b16 %v470, %v467
    %v597 = vpack.c.b16 %v471, %v468
    %v598 = vpack.c.b16 %v475, %v472
    %v599 = vpack.c.b16 %v476, %v473
    %v600 = vpack.c.b16 %v477, %v474
    %v601 = vpack.c.b16 %v481, %v478
    %v602 = vpack.c.b16 %v482, %v479
    %v603 = vpack.c.b16 %v483, %v480
    %v604 = vpack.c.b16 %v487, %v484
    %v605 = vpack.c.b16 %v488, %v485
    %v606 = vpack.c.b16 %v489, %v486
    %v607 = vpack.c.b16 %v493, %v490
    %v608 = vpack.c.b16 %v494, %v491
    %v609 = vpack.c.b16 %v495, %v492
    %v610 = vpack.c.b16 %v499, %v496
    %v611 = vpack.c.b16 %v500, %v497
    %v612 = vpack.c.b16 %v501, %v498
    %v613 = vpack.c.b16 %v505, %v502
    %v614 = vpack.c.b16 %v506, %v503
    %v615 = vpack.c.b16 %v507, %v504
    %v616 = vpack.c.b16 %v511, %v508
    %v617 = vpack.c.b16 %v512, %v509
    %v618 = vpack.c.b16 %v513, %v510
    %v619 = vpack.c.b16 %v517, %v514
    %v620 = vpack.c.b16 %v518, %v515
    %v621 = vpack.c.b16 %v519, %v516
    %v622 = vpack.c.b16 %v523, %v520
    %v623 = vpack.c.b16 %v524, %v521
    %v624 = vpack.c.b16 %v525, %v522
    %v625 = vpack.c.b16 %v529, %v526
    %v626 = vpack.c.b16 %v530, %v527
    %v627 = vpack.c.b16 %v531, %v528
    %v628 = vpack.c.b16 %v535, %v532
    %v629 = vpack.c.b16 %v536, %v533
    %v630 = vpack.c.b16 %v537, %v534
    %v631 = vpack.c.b16 %v541, %v538
    %v632 = vpack.c.b16 %v542, %v539
    %v633 = vpack.c.b16 %v543, %v540
    %v634 = vpack.c.b16 %v547, %v544
    %v635 = vpack.c.b16 %v548, %v545
    %v636 = vpack.c.b16 %v549, %v546
    %v637 = vpack.c.b16 %v553, %v550
    %v638 = vpack.c.b16 %v554, %v551
    %v639 = vpack.c.b16 %v555, %v552
    %v640 = vpack.c.b16 %v559, %v556
    %v641 = vpack.c.b16 %v560, %v557
    %v642 = vpack.c.b16 %v561, %v558
    %v643 = vpack.c.b16 %v565, %v562
    %v644 = vpack.c.b16 %v566, %v563
    %v645 = vpack.c.b16 %v567, %v564
    %v646 = vpack.c.b16 %v571, %v568
    %v647 = vpack.c.b16 %v572, %v569
    %v648 = vpack.c.b16 %v573, %v570
    %v649 = vpack.c.b16 %v577, %v574
    %v650 = vpack.c.b16 %v578, %v575
    %v651 = vpack.c.b16 %v579, %v576
    %724 = vmatpush.bf16.msra.mxu0 %v601
    %725 = vmatpush.bf16.msra.mxu0 %v598
    %726 = vmatpush.bf16.msra.mxu0 %v595
    %727 = vmatpush.bf16.msra.mxu0 %v592
    %728 = vmatpush.bf16.msra.mxu0 %v589
    %729 = vmatpush.bf16.msra.mxu0 %v586
    %730 = vmatpush.bf16.msra.mxu0 %v583
    %731 = vmatpush.bf16.msra.mxu0 %v580
    %732 = vmatmul.bf16.gmra.mxu0 %v233
    %v733 = vpop.f32.mrf.mxu0
    %v734 = vadd.f32 %v334, %v733
    %v735 = vpop.f32.mrf.mxu0
    %736 = vdwg.mxu0
    %737 = vmatpush.bf16.msra.mxu0 %v625
    %738 = vmatpush.bf16.msra.mxu0 %v622
    %739 = vmatpush.bf16.msra.mxu0 %v619
    %740 = vmatpush.bf16.msra.mxu0 %v616
    %741 = vmatpush.bf16.msra.mxu0 %v613
    %742 = vmatpush.bf16.msra.mxu0 %v610
    %743 = vmatpush.bf16.msra.mxu0 %v607
    %744 = vmatpush.bf16.msra.mxu0 %v604
    %745 = vmatmul.bf16.gmra.mxu0 %v234
    %v746 = vpop.f32.mrf.mxu0
    %v747 = vadd.f32 %v734, %v746
    %v748 = vpop.f32.mrf.mxu0
    %749 = vdwg.mxu0
    %750 = vmatpush.bf16.msra.mxu0 %v649
    %751 = vmatpush.bf16.msra.mxu0 %v646
    %752 = vmatpush.bf16.msra.mxu0 %v643
    %753 = vmatpush.bf16.msra.mxu0 %v640
    %754 = vmatpush.bf16.msra.mxu0 %v637
    %755 = vmatpush.bf16.msra.mxu0 %v634
    %756 = vmatpush.bf16.msra.mxu0 %v631
    %757 = vmatpush.bf16.msra.mxu0 %v628
    %758 = vmatmul.bf16.gmra.mxu0 %v235
    %v759 = vpop.f32.mrf.mxu0
    %v760 = vadd.f32 %v747, %v759
    %v761 = vpop.f32.mrf.mxu0
    %762 = vdwg.mxu0
    %763 = vmatpush.bf16.msra.mxu0 %v602
    %764 = vmatpush.bf16.msra.mxu0 %v599
    %765 = vmatpush.bf16.msra.mxu0 %v596
    %766 = vmatpush.bf16.msra.mxu0 %v593
    %767 = vmatpush.bf16.msra.mxu0 %v590
    %768 = vmatpush.bf16.msra.mxu0 %v587
    %769 = vmatpush.bf16.msra.mxu0 %v584
    %770 = vmatpush.bf16.msra.mxu0 %v581
    %771 = vmatmul.bf16.gmra.mxu0 %v233
    %v772 = vpop.f32.mrf.mxu0
    %v773 = vadd.f32 %v335, %v772
    %v774 = vpop.f32.mrf.mxu0
    %775 = vdwg.mxu0
    %776 = vmatpush.bf16.msra.mxu0 %v626
    %777 = vmatpush.bf16.msra.mxu0 %v623
    %778 = vmatpush.bf16.msra.mxu0 %v620
    %779 = vmatpush.bf16.msra.mxu0 %v617
    %780 = vmatpush.bf16.msra.mxu0 %v614
    %781 = vmatpush.bf16.msra.mxu0 %v611
    %782 = vmatpush.bf16.msra.mxu0 %v608
    %783 = vmatpush.bf16.msra.mxu0 %v605
    %784 = vmatmul.bf16.gmra.mxu0 %v234
    %v785 = vpop.f32.mrf.mxu0
    %v786 = vadd.f32 %v773, %v785
    %v787 = vpop.f32.mrf.mxu0
    %788 = vdwg.mxu0
    %789 = vmatpush.bf16.msra.mxu0 %v650
    %790 = vmatpush.bf16.msra.mxu0 %v647
    %791 = vmatpush.bf16.msra.mxu0 %v644
    %792 = vmatpush.bf16.msra.mxu0 %v641
    %793 = vmatpush.bf16.msra.mxu0 %v638
    %794 = vmatpush.bf16.msra.mxu0 %v635
    %795 = vmatpush.bf16.msra.mxu0 %v632
    %796 = vmatpush.bf16.msra.mxu0 %v629
    %797 = vmatmul.bf16.gmra.mxu0 %v235
    %v798 = vpop.f32.mrf.mxu0
    %v799 = vadd.f32 %v786, %v798
    %v800 = vpop.f32.mrf.mxu0
    %801 = vdwg.mxu0
    %802 = vmatpush.bf16.msra.mxu0 %v603
    %803 = vmatpush.bf16.msra.mxu0 %v600
    %804 = vmatpush.bf16.msra.mxu0 %v597
    %805 = vmatpush.bf16.msra.mxu0 %v594
    %806 = vmatpush.bf16.msra.mxu0 %v591
    %807 = vmatpush.bf16.msra.mxu0 %v588
    %808 = vmatpush.bf16.msra.mxu0 %v585
    %809 = vmatpush.bf16.msra.mxu0 %v582
    %810 = vmatmul.bf16.gmra.mxu0 %v233
    %v811 = vpop.f32.mrf.mxu0
    %v812 = vadd.f32 %v336, %v811
    %v813 = vpop.f32.mrf.mxu0
    %814 = vdwg.mxu0
    %815 = vmatpush.bf16.msra.mxu0 %v627
    %816 = vmatpush.bf16.msra.mxu0 %v624
    %817 = vmatpush.bf16.msra.mxu0 %v621
    %818 = vmatpush.bf16.msra.mxu0 %v618
    %819 = vmatpush.bf16.msra.mxu0 %v615
    %820 = vmatpush.bf16.msra.mxu0 %v612
    %821 = vmatpush.bf16.msra.mxu0 %v609
    %822 = vmatpush.bf16.msra.mxu0 %v606
    %823 = vmatmul.bf16.gmra.mxu0 %v234
    %v824 = vpop.f32.mrf.mxu0
    %v825 = vadd.f32 %v812, %v824
    %v826 = vpop.f32.mrf.mxu0
    %827 = vdwg.mxu0
    %828 = vmatpush.bf16.msra.mxu0 %v651
    %829 = vmatpush.bf16.msra.mxu0 %v648
    %830 = vmatpush.bf16.msra.mxu0 %v645
    %831 = vmatpush.bf16.msra.mxu0 %v642
    %832 = vmatpush.bf16.msra.mxu0 %v639
    %833 = vmatpush.bf16.msra.mxu0 %v636
    %834 = vmatpush.bf16.msra.mxu0 %v633
    %835 = vmatpush.bf16.msra.mxu0 %v630
    %836 = vmatmul.bf16.gmra.mxu0 %v235
    %v837 = vpop.f32.mrf.mxu0
    %v838 = vadd.f32 %v825, %v837
    %v839 = vpop.f32.mrf.mxu0
    %840 = vdwg.mxu0
    %v841 = vxor.u32 %v760, 2147483648
    %v842 = vxor.u32 %v799, 2147483648
    %v843 = vxor.u32 %v838, 2147483648
    %v844 = vmul.f32 %v841, 1.442695
    %v845 = vpow.pop %v844
    %v846 = vmul.f32 %v842, 1.442695
    %v847 = vpow.pop %v846
    %v848 = vmul.f32 %v843, 1.442695
    %v849 = vpow.pop %v848
    %v850 = vadd.f32 %v845, 1.0
    %v851 = vadd.f32 %v847, 1.0
    %v852 = vadd.f32 %v849, 1.0
    %v853 = vrcp.pop %v850
    %v854 = vmul.f32 %v850, %v853
    %v855 = vsub.f32 1.0, %v854
    %v856 = vmul.f32 %v853, %v855
    %v857 = vadd.f32 %v853, %v856
    %vm858 = vweird.f32 %v850
    %vm859 = vweird.f32 %v853
    %vm860 = vmor %vm858, %vm859
    %v861 = vsel %vm860, %v853, %v857
    %v862 = vand.u32 2147483647, %v850
    %vm863 = vcmp.eq.f32.partialorder %v862, 8.507059e+37
    %v864 = vand.u32 %v850, 2147483648
    %v865 = vor.u32 1.1754944e-38, %v864
    %v866 = vsel %vm863, %v865, %v861
    %v867 = vmul.f32 1.0, %v866
    %v868 = vrcp.pop %v851
    %v869 = vmul.f32 %v851, %v868
    %v870 = vsub.f32 1.0, %v869
    %v871 = vmul.f32 %v868, %v870
    %v872 = vadd.f32 %v868, %v871
    %vm873 = vweird.f32 %v851
    %vm874 = vweird.f32 %v868
    %vm875 = vmor %vm873, %vm874
    %v876 = vsel %vm875, %v868, %v872
    %v877 = vand.u32 2147483647, %v851
    %vm878 = vcmp.eq.f32.partialorder %v877, 8.507059e+37
    %v879 = vand.u32 %v851, 2147483648
    %v880 = vor.u32 1.1754944e-38, %v879
    %v881 = vsel %vm878, %v880, %v876
    %v882 = vmul.f32 1.0, %v881
    %v883 = vrcp.pop %v852
    %v884 = vmul.f32 %v852, %v883
    %v885 = vsub.f32 1.0, %v884
    %v886 = vmul.f32 %v883, %v885
    %v887 = vadd.f32 %v883, %v886
    %vm888 = vweird.f32 %v852
    %vm889 = vweird.f32 %v883
    %vm890 = vmor %vm888, %vm889
    %v891 = vsel %vm890, %v883, %v887
    %v892 = vand.u32 2147483647, %v852
    %vm893 = vcmp.eq.f32.partialorder %v892, 8.507059e+37
    %v894 = vand.u32 %v852, 2147483648
    %v895 = vor.u32 1.1754944e-38, %v894
    %v896 = vsel %vm893, %v895, %v891
    %v897 = vmul.f32 1.0, %v896
    %v898 = vpack.c.bf16 %v867, %v867
    %v899 = vpack.c.bf16 %v882, %v882
    %v900 = vpack.c.bf16 %v897, %v897
    %v901 = vld [vmem:[#allocation10] sm:$0xf]
    %v902 = vld [vmem:[#allocation10 + $0x4] sm:$0xf]
    %v903 = vld [vmem:[#allocation10 + $0x8] sm:$0xf]
    %v904 = vld [vmem:[#allocation10 + $0xc] sm:$0xf]
    %v905 = vld [vmem:[#allocation10 + $0x10] sm:$0xf]
    %v906 = vld [vmem:[#allocation10 + $0x14] sm:$0xf]
    %v907 = vld [vmem:[#allocation10 + $0x18] sm:$0xf]
    %v908 = vld [vmem:[#allocation10 + $0x1c] sm:$0xf]
    %v909 = vld [vmem:[#allocation10 + $0x20] sm:$0xf]
    %v910 = vld [vmem:[#allocation10 + $0x24] sm:$0xf]
    %v911 = vld [vmem:[#allocation10 + $0x28] sm:$0xf]
    %v912 = vld [vmem:[#allocation10 + $0x2c] sm:$0xf]
    %v913 = vld [vmem:[#allocation10 + $0x30] sm:$0xf]
    %v914 = vld [vmem:[#allocation10 + $0x34] sm:$0xf]
    %v915 = vld [vmem:[#allocation10 + $0x38] sm:$0xf]
    %v916 = vld [vmem:[#allocation10 + $0x3c] sm:$0xf]
    %v917 = vld [vmem:[#allocation10 + $0x40] sm:$0xf]
    %v918 = vld [vmem:[#allocation10 + $0x44] sm:$0xf]
    %v919 = vld [vmem:[#allocation10 + $0x48] sm:$0xf]
    %v920 = vld [vmem:[#allocation10 + $0x4c] sm:$0xf]
    %v921 = vld [vmem:[#allocation10 + $0x50] sm:$0xf]
    %v922 = vld [vmem:[#allocation10 + $0x54] sm:$0xf]
    %v923 = vld [vmem:[#allocation10 + $0x58] sm:$0xf]
    %v924 = vld [vmem:[#allocation10 + $0x5c] sm:$0xf]
    %v925 = vld [vmem:[#allocation10 + $0x60] sm:$0xf]
    %v926 = vld [vmem:[#allocation10 + $0x64] sm:$0xf]
    %v927 = vld [vmem:[#allocation10 + $0x68] sm:$0xf]
    %v928 = vld [vmem:[#allocation10 + $0x6c] sm:$0xf]
    %v929 = vld [vmem:[#allocation10 + $0x70] sm:$0xf]
    %v930 = vld [vmem:[#allocation10 + $0x74] sm:$0xf]
    %v931 = vld [vmem:[#allocation10 + $0x78] sm:$0xf]
    %v932 = vld [vmem:[#allocation10 + $0x7c] sm:$0xf]
    %v933 = vld [vmem:[#allocation10 + $0x80] sm:$0xf]
    %v934 = vld [vmem:[#allocation10 + $0x84] sm:$0xf]
    %v935 = vld [vmem:[#allocation10 + $0x88] sm:$0xf]
    %v936 = vld [vmem:[#allocation10 + $0x8c] sm:$0xf]
    %v937 = vld [vmem:[#allocation10 + $0x90] sm:$0xf]
    %v938 = vld [vmem:[#allocation10 + $0x94] sm:$0xf]
    %v939 = vld [vmem:[#allocation10 + $0x98] sm:$0xf]
    %v940 = vld [vmem:[#allocation10 + $0x9c] sm:$0xf]
    %v941 = vld [vmem:[#allocation10 + $0xa0] sm:$0xf]
    %v942 = vld [vmem:[#allocation10 + $0xa4] sm:$0xf]
    %v943 = vld [vmem:[#allocation10 + $0xa8] sm:$0xf]
    %v944 = vld [vmem:[#allocation10 + $0xac] sm:$0xf]
    %v945 = vld [vmem:[#allocation10 + $0xb0] sm:$0xf]
    %v946 = vld [vmem:[#allocation10 + $0xb4] sm:$0xf]
    %v947 = vld [vmem:[#allocation10 + $0xb8] sm:$0xf]
    %v948 = vld [vmem:[#allocation10 + $0xbc] sm:$0xf]
    %v949 = vld [vmem:[%s6] sm:$0x1]
    %v951 = vperm.slane %v949, 0
    %v1001 = vunpack.c.l.b16 %v901
    %v1002 = vunpack.c.l.b16 %v902
    %v1003 = vunpack.c.l.b16 %v903
    %v1004 = vunpack.c.l.b16 %v904
    %v1005 = vunpack.c.l.b16 %v905
    %v1006 = vunpack.c.l.b16 %v906
    %v1007 = vunpack.c.l.b16 %v907
    %v1008 = vunpack.c.l.b16 %v908
    %v1009 = vunpack.c.l.b16 %v909
    %v1010 = vunpack.c.l.b16 %v910
    %v1011 = vunpack.c.l.b16 %v911
    %v1012 = vunpack.c.l.b16 %v912
    %v1013 = vunpack.c.l.b16 %v913
    %v1014 = vunpack.c.l.b16 %v914
    %v1015 = vunpack.c.l.b16 %v915
    %v1016 = vunpack.c.l.b16 %v916
    %v1017 = vunpack.c.l.b16 %v917
    %v1018 = vunpack.c.l.b16 %v918
    %v1019 = vunpack.c.l.b16 %v919
    %v1020 = vunpack.c.l.b16 %v920
    %v1021 = vunpack.c.l.b16 %v921
    %v1022 = vunpack.c.l.b16 %v922
    %v1023 = vunpack.c.l.b16 %v923
    %v1024 = vunpack.c.l.b16 %v924
    %v1025 = vunpack.c.l.b16 %v925
    %v1026 = vunpack.c.l.b16 %v926
    %v1027 = vunpack.c.l.b16 %v927
    %v1028 = vunpack.c.l.b16 %v928
    %v1029 = vunpack.c.l.b16 %v929
    %v1030 = vunpack.c.l.b16 %v930
    %v1031 = vunpack.c.l.b16 %v931
    %v1032 = vunpack.c.l.b16 %v932
    %v1033 = vunpack.c.l.b16 %v933
    %v1034 = vunpack.c.l.b16 %v934
    %v1035 = vunpack.c.l.b16 %v935
    %v1036 = vunpack.c.l.b16 %v936
    %v1037 = vunpack.c.l.b16 %v937
    %v1038 = vunpack.c.l.b16 %v938
    %v1039 = vunpack.c.l.b16 %v939
    %v1040 = vunpack.c.l.b16 %v940
    %v1041 = vunpack.c.l.b16 %v941
    %v1042 = vunpack.c.l.b16 %v942
    %v1043 = vunpack.c.l.b16 %v943
    %v1044 = vunpack.c.l.b16 %v944
    %v1045 = vunpack.c.l.b16 %v945
    %v1046 = vunpack.c.l.b16 %v946
    %v1047 = vunpack.c.l.b16 %v947
    %v1048 = vunpack.c.l.b16 %v948
    %v1049 = vpack.c.b16 %v1002, %v1001
    %v1050 = vpack.c.b16 %v1004, %v1003
    %v1051 = vpack.c.b16 %v1006, %v1005
    %v1052 = vpack.c.b16 %v1008, %v1007
    %v1053 = vpack.c.b16 %v1010, %v1009
    %v1054 = vpack.c.b16 %v1012, %v1011
    %v1055 = vpack.c.b16 %v1014, %v1013
    %v1056 = vpack.c.b16 %v1016, %v1015
    %v1057 = vpack.c.b16 %v1018, %v1017
    %v1058 = vpack.c.b16 %v1020, %v1019
    %v1059 = vpack.c.b16 %v1022, %v1021
    %v1060 = vpack.c.b16 %v1024, %v1023
    %v1061 = vpack.c.b16 %v1026, %v1025
    %v1062 = vpack.c.b16 %v1028, %v1027
    %v1063 = vpack.c.b16 %v1030, %v1029
    %v1064 = vpack.c.b16 %v1032, %v1031
    %v1065 = vpack.c.b16 %v1034, %v1033
    %v1066 = vpack.c.b16 %v1036, %v1035
    %v1067 = vpack.c.b16 %v1038, %v1037
    %v1068 = vpack.c.b16 %v1040, %v1039
    %v1069 = vpack.c.b16 %v1042, %v1041
    %v1070 = vpack.c.b16 %v1044, %v1043
    %v1071 = vpack.c.b16 %v1046, %v1045
    %v1072 = vpack.c.b16 %v1048, %v1047
    %1097 = vmatpush.bf16.msra.mxu0 %v1056
    %1098 = vmatpush.bf16.msra.mxu0 %v1055
    %1099 = vmatpush.bf16.msra.mxu0 %v1054
    %1100 = vmatpush.bf16.msra.mxu0 %v1053
    %1101 = vmatpush.bf16.msra.mxu0 %v1052
    %1102 = vmatpush.bf16.msra.mxu0 %v1051
    %1103 = vmatpush.bf16.msra.mxu0 %v1050
    %1104 = vmatpush.bf16.msra.mxu0 %v1049
    %1105 = vmatmul.bf16.gmra.mxu0 %v898
    %v1106 = vpop.f32.mrf.mxu0
    %v1107 = vadd.f32 %v951, %v1106
    %v1108 = vpop.f32.mrf.mxu0
    %1109 = vdwg.mxu0
    %1110 = vmatpush.bf16.msra.mxu0 %v1064
    %1111 = vmatpush.bf16.msra.mxu0 %v1063
    %1112 = vmatpush.bf16.msra.mxu0 %v1062
    %1113 = vmatpush.bf16.msra.mxu0 %v1061
    %1114 = vmatpush.bf16.msra.mxu0 %v1060
    %1115 = vmatpush.bf16.msra.mxu0 %v1059
    %1116 = vmatpush.bf16.msra.mxu0 %v1058
    %1117 = vmatpush.bf16.msra.mxu0 %v1057
    %1118 = vmatmul.bf16.gmra.mxu0 %v899
    %v1119 = vpop.f32.mrf.mxu0
    %v1120 = vadd.f32 %v1107, %v1119
    %v1121 = vpop.f32.mrf.mxu0
    %1122 = vdwg.mxu0
    %1123 = vmatpush.bf16.msra.mxu0 %v1072
    %1124 = vmatpush.bf16.msra.mxu0 %v1071
    %1125 = vmatpush.bf16.msra.mxu0 %v1070
    %1126 = vmatpush.bf16.msra.mxu0 %v1069
    %1127 = vmatpush.bf16.msra.mxu0 %v1068
    %1128 = vmatpush.bf16.msra.mxu0 %v1067
    %1129 = vmatpush.bf16.msra.mxu0 %v1066
    %1130 = vmatpush.bf16.msra.mxu0 %v1065
    %1131 = vmatmul.bf16.gmra.mxu0 %v900
    %v1132 = vpop.f32.mrf.mxu0
    %v1133 = vadd.f32 %v1120, %v1132
    %v1134 = vpop.f32.mrf.mxu0
    %1135 = vdwg.mxu0
    %1136 = vst [vmem:[#allocation11] sm:$0xff] %v1133
    // Predicated region
    $region50: #{tpu_custom_call.1} parent=1 // pred_check
      _
    $region51: #{tpu_custom_call.1} parent=1 // pred_check_branch
      %1138 = sbr.rel (0) target = $region53
    $region52: #{tpu_custom_call.1} parent=1 // pred_region
      %1140 = vsyncadd [#allocation4], 0
      %s1142 = sshll.u32 [#allocation11], 4
      %s1143 = int_to_ptr.vmem [resolvable:$true] %s1142
      %s1144 = sshll.u32 %s7, 4
      %s1145 = int_to_ptr.hbm [resolvable:$true] %s1144
      %1147 = dma.vmem_to_hbm [thread:$0]  %s1143, 128, %s1145, [#allocation4]
    $region53: #{tpu_custom_call.1} parent=1 // pred_fallthru
      _
    // Predicated region
    $region54: #{tpu_custom_call.1} parent=1 // pred_check
      _
    $region55: #{tpu_custom_call.1} parent=1 // pred_check_branch
      %1149 = sbr.rel (0) target = $region57
    $region56: #{tpu_custom_call.1} parent=1 // pred_region
      %1151 = dma.done [#allocation4], 128
    $region57: #{tpu_custom_call.1} parent=1 // pred_fallthru
      _
    %1152 = vsyncpa [#allocation3], 1
    %1153 = vsyncpa [#allocation6], 1
    %1154 = vsyncpa [#allocation9], 1
    %1155 = vsyncpa [#allocation4], 1

</llo_original>
